<compile_context>
chip_gen: v7x
topology: tpu7x:2x2x1
jax: 0.10.0
libtpu: 0.0.40
codegen_flags: <defaults>
</compile_context>

<pallas_src>
import functools

import jax
import jax.numpy as jnp
from jax import lax
from jax.experimental import pallas as pl
from jax.experimental.pallas import tpu as pltpu

BN_EPS = 1e-5
LANE = 128
SUBLANE = 8


def _round_up(n, m):
    return ((n + m - 1) // m) * m


def _pad_axis(a, axis, target):
    pad = target - a.shape[axis]
    if pad <= 0:
        return a
    widths = [(0, 0)] * a.ndim
    widths[axis] = (0, pad)
    return jnp.pad(a, widths)


def bottom_model_plus_kernel(x_ref, wb_ref, wf_ref, p_ref, o_ref, *, batch):
    """Fused Linear -> BatchNorm1d (train stats) -> ReLU -> Linear.

    p_ref rows: 0 = gamma, 1 = beta, 2 = fc_final bias.
    Lane dims are padded to multiples of 128 and the batch dim to a multiple of 8.
    Padded columns AND padded rows of h are exactly zero, so the per-column BN
    statistics of the real columns over the real batch are unaffected (the divisor
    below is the real batch size, a compile-time constant).
    The bottom-model bias is intentionally omitted: it cancels under BN's mean
    subtraction, so the result is bit-for-bit the same math with fewer VALU ops.
    """
    # Linear #1 on the MXU (bf16/f32 operands, f32 accumulation).
    h = jnp.dot(x_ref[...], wb_ref[...], preferred_element_type=jnp.float32)

    # BatchNorm1d training-mode batch statistics, single pass (sum + sum of squares).
    inv_b = jnp.float32(1.0 / batch)
    mean = jnp.sum(h, axis=0, keepdims=True) * inv_b
    ex2 = jnp.sum(h * h, axis=0, keepdims=True) * inv_b
    var = jnp.maximum(ex2 - mean * mean, 0.0)          # biased variance

    # Fused affine: one multiply-add per element; rsqrt goes to the EUP slot.
    scale = p_ref[0:1, :] * lax.rsqrt(var + BN_EPS)    # gamma / sqrt(var + eps)
    shift = p_ref[1:2, :] - mean * scale               # beta - mean * scale
    h = jnp.maximum(h * scale + shift, 0.0)            # BN affine + ReLU fused

    # Linear #2 (fc_final).  Cast activations to the weight dtype for the MXU.
    # TODO(synk): if the ones-init of fc_final.weight is guaranteed at call time,
    #             this dot could be replaced by a broadcast row-sum of h.
    y = jnp.dot(h.astype(wf_ref.dtype), wf_ref[...],
                preferred_element_type=jnp.float32)
    o_ref[...] = (y + p_ref[2:3, :]).astype(o_ref.dtype)


def bottom_model_plus(x, wb, bb, gamma, beta, wf, bf,
                      compute_dtype=jnp.bfloat16):
    """Forward pass of BottomModelPlus as a single fused Pallas kernel.

    x: (B, F)   wb: (F, E)   bb/gamma/beta: (E,)-like   wf: (E, O)   bf: (O,)-like.
    Returns (B, O) float32.
    """
    B, F = x.shape
    E = wb.shape[1]
    O = wf.shape[1]

    Bp = _round_up(B, SUBLANE)       # padded rows are zero -> BN stats unaffected
    Fp = _round_up(F, LANE)
    P = _round_up(max(E, O), LANE)   # shared padded lane width for E and O

    # Lane-dense, zero-padded operands (narrow DMAs: bf16 halves the bytes moved).
    xp = _pad_axis(_pad_axis(x, 0, Bp), 1, Fp).astype(compute_dtype)
    wbp = _pad_axis(_pad_axis(wb, 0, Fp), 1, P).astype(compute_dtype)
    wfp = _pad_axis(_pad_axis(wf, 0, P), 1, P).astype(compute_dtype)

    # bb is NOT shipped to the kernel: it cancels exactly under BatchNorm's mean
    # subtraction (saves VALU adds + one DMA and avoids a constant offset in h).
    del bb

    # Pack the three small per-column vectors into ONE VMEM input (fewer DMA descriptors).
    params = jnp.stack([
        _pad_axis(jnp.asarray(gamma).reshape(-1), 0, P),
        _pad_axis(jnp.asarray(beta).reshape(-1), 0, P),
        _pad_axis(jnp.asarray(bf).reshape(-1), 0, P),
    ]).astype(jnp.float32)                               # (3, P)

    vmem = pl.BlockSpec(memory_space=pltpu.MemorySpace.VMEM)
    kernel = functools.partial(bottom_model_plus_kernel, batch=B)
    out = pl.pallas_call(
        kernel,
        out_shape=jax.ShapeDtypeStruct((Bp, P), jnp.float32),  # lane-dense output slab
        in_specs=[vmem, vmem, vmem, vmem],
        out_specs=vmem,
    )(xp, wbp, wfp, params)
    return out[:B, :O]


def reference(x, wb, bb, gamma, beta, wf, bf):
    h = x @ wb + bb.reshape(1, -1)
    mean = jnp.mean(h, axis=0, keepdims=True)
    var = jnp.mean((h - mean) ** 2, axis=0, keepdims=True)
    h = (h - mean) / jnp.sqrt(var + BN_EPS)
    h = h * gamma.reshape(1, -1) + beta.reshape(1, -1)
    h = jnp.maximum(h, 0.0)
    return h @ wf + bf.reshape(1, -1)


if __name__ == "__main__":
    # Small shapes consistent with the module's forward (bottom_model = Linear(F, E)):
    B, F, E, O = 8, 16, 32, 8   # batch, input features, emb_size, out_size

    key = jax.random.PRNGKey(0)
    kx, kwb, kbb, kbf = jax.random.split(key, 4)

    x = jax.random.normal(kx, (B, F), dtype=jnp.float32)

    # bottom_model = nn.Linear(F, E): PyTorch-style uniform init range, stored as [in, out].
    lim_b = 1.0 / jnp.sqrt(jnp.float32(F))
    wb = jax.random.uniform(kwb, (F, E), jnp.float32, -lim_b, lim_b)
    bb = jax.random.uniform(kbb, (E,), jnp.float32, -lim_b, lim_b)

    # bn_final = nn.BatchNorm1d(E) at construction: gamma=1, beta=0.
    gamma = jnp.ones((E,), jnp.float32)
    beta = jnp.zeros((E,), jnp.float32)

    # fc_final = nn.Linear(E, O): weight set to ones by weights_init_ones; default bias.
    wf = jnp.ones((E, O), jnp.float32)
    lim_f = 1.0 / jnp.sqrt(jnp.float32(E))
    bf = jax.random.uniform(kbf, (O,), jnp.float32, -lim_f, lim_f)

    ref = reference(x, wb, bb, gamma, beta, wf, bf)

    # Exactness check: f32 MXU path matches the PyTorch-style reference tightly
    # (also validates the bias-cancellation fold).
    out_f32 = jax.block_until_ready(
        bottom_model_plus(x, wb, bb, gamma, beta, wf, bf, compute_dtype=jnp.float32))
    assert out_f32.shape == (B, O)
    assert jnp.allclose(out_f32, ref, atol=1e-3, rtol=1e-4), (out_f32, ref)

    # Fast path: bf16 MXU operands with f32 accumulation (looser tolerance).
    out_bf16 = jax.block_until_ready(
        bottom_model_plus(x, wb, bb, gamma, beta, wf, bf, compute_dtype=jnp.bfloat16))
    assert out_bf16.shape == (B, O)
    assert jnp.allclose(out_bf16, ref, atol=5e-2, rtol=5e-2), (out_bf16, ref)

    # Unaligned batch (B % 8 != 0): padded zero rows leave the BN stats exact.
    Bu = 6
    xu = jax.random.normal(jax.random.PRNGKey(1), (Bu, F), dtype=jnp.float32)
    ref_u = reference(xu, wb, bb, gamma, beta, wf, bf)
    out_u = jax.block_until_ready(
        bottom_model_plus(xu, wb, bb, gamma, beta, wf, bf, compute_dtype=jnp.float32))
    assert out_u.shape == (Bu, O)
    assert jnp.allclose(out_u, ref_u, atol=1e-3, rtol=1e-4), (out_u, ref_u)

    print("KERNEL_OK")
</pallas_src>

<mosaic_0001>
module attributes {stable_mosaic.version = 11 : i64} {
  func.func @bottom_model_plus_kernel(%arg0: memref<8x128xf32, #tpu.memory_space<vmem>>, %arg1: memref<128x128xf32, #tpu.memory_space<vmem>>, %arg2: memref<128x128xf32, #tpu.memory_space<vmem>>, %arg3: memref<3x128xf32, #tpu.memory_space<vmem>>, %arg4: memref<8x128xf32, #tpu.memory_space<vmem>>) attributes {dimension_semantics = [], scalar_prefetch = 0 : i64, scratch_operands = 0 : i64, tpu.core_type = #tpu.core_type<tc>} {
    %c0 = arith.constant 0 : index
    %c0_0 = arith.constant 0 : index
    %0 = vector.load %arg0[%c0, %c0_0] : memref<8x128xf32, #tpu.memory_space<vmem>>, vector<8x128xf32>
    %c0_1 = arith.constant 0 : index
    %c0_2 = arith.constant 0 : index
    %1 = vector.load %arg1[%c0_1, %c0_2] : memref<128x128xf32, #tpu.memory_space<vmem>>, vector<128x128xf32>
    %cst = arith.constant dense<0.000000e+00> : vector<8x128xf32>
    %2 = tpu.matmul %0, %1, %cst {dimension_numbers = #tpu.dot_dimension_numbers<[1], [0], [0], [1], [0, 0, 1, 1], [], []>} : vector<8x128xf32>, vector<128x128xf32>, vector<8x128xf32> -> vector<8x128xf32>
    %cst_3 = arith.constant dense<0.000000e+00> : vector<128xf32>
    %3 = vector.multi_reduction <add>, %2, %cst_3 [0] : vector<8x128xf32> to vector<128xf32>
    %4 = vector.shape_cast %3 : vector<128xf32> to vector<1x128xf32>
    %cst_4 = arith.constant 1.250000e-01 : f32
    %5 = vector.broadcast %cst_4 : f32 to vector<1x128xf32>
    %6 = arith.mulf %4, %5 : vector<1x128xf32>
    %7 = arith.mulf %2, %2 : vector<8x128xf32>
    %cst_5 = arith.constant dense<0.000000e+00> : vector<128xf32>
    %8 = vector.multi_reduction <add>, %7, %cst_5 [0] : vector<8x128xf32> to vector<128xf32>
    %9 = vector.shape_cast %8 : vector<128xf32> to vector<1x128xf32>
    %cst_6 = arith.constant 1.250000e-01 : f32
    %10 = vector.broadcast %cst_6 : f32 to vector<1x128xf32>
    %11 = arith.mulf %9, %10 : vector<1x128xf32>
    %12 = arith.mulf %6, %6 : vector<1x128xf32>
    %13 = arith.subf %11, %12 : vector<1x128xf32>
    %cst_7 = arith.constant 0.000000e+00 : f32
    %14 = vector.broadcast %cst_7 : f32 to vector<1x128xf32>
    %15 = arith.maximumf %13, %14 : vector<1x128xf32>
    %c0_8 = arith.constant 0 : index
    %c0_9 = arith.constant 0 : index
    %16 = vector.load %arg3[%c0_8, %c0_9] : memref<3x128xf32, #tpu.memory_space<vmem>>, vector<1x128xf32>
    %cst_10 = arith.constant 9.99999974E-6 : f32
    %17 = vector.broadcast %cst_10 : f32 to vector<1x128xf32>
    %18 = arith.addf %15, %17 : vector<1x128xf32>
    %19 = math.rsqrt %18 : vector<1x128xf32>
    %20 = arith.mulf %16, %19 : vector<1x128xf32>
    %c1 = arith.constant 1 : index
    %c0_11 = arith.constant 0 : index
    %21 = vector.load %arg3[%c1, %c0_11] : memref<3x128xf32, #tpu.memory_space<vmem>>, vector<1x128xf32>
    %22 = arith.mulf %6, %20 : vector<1x128xf32>
    %23 = arith.subf %21, %22 : vector<1x128xf32>
    %24 = vector.broadcast %20 : vector<1x128xf32> to vector<8x128xf32>
    %25 = arith.mulf %2, %24 : vector<8x128xf32>
    %26 = vector.broadcast %23 : vector<1x128xf32> to vector<8x128xf32>
    %27 = arith.addf %25, %26 : vector<8x128xf32>
    %cst_12 = arith.constant 0.000000e+00 : f32
    %28 = vector.broadcast %cst_12 : f32 to vector<8x128xf32>
    %29 = arith.maximumf %27, %28 : vector<8x128xf32>
    %c0_13 = arith.constant 0 : index
    %c0_14 = arith.constant 0 : index
    %30 = vector.load %arg2[%c0_13, %c0_14] : memref<128x128xf32, #tpu.memory_space<vmem>>, vector<128x128xf32>
    %cst_15 = arith.constant dense<0.000000e+00> : vector<8x128xf32>
    %31 = tpu.matmul %29, %30, %cst_15 {dimension_numbers = #tpu.dot_dimension_numbers<[1], [0], [0], [1], [0, 0, 1, 1], [], []>} : vector<8x128xf32>, vector<128x128xf32>, vector<8x128xf32> -> vector<8x128xf32>
    %c2 = arith.constant 2 : index
    %c0_16 = arith.constant 0 : index
    %32 = vector.load %arg3[%c2, %c0_16] : memref<3x128xf32, #tpu.memory_space<vmem>>, vector<1x128xf32>
    %33 = vector.broadcast %32 : vector<1x128xf32> to vector<8x128xf32>
    %34 = arith.addf %31, %33 : vector<8x128xf32>
    %c0_17 = arith.constant 0 : index
    %c0_18 = arith.constant 0 : index
    %35 = vector.load %arg4[%c0_17, %c0_18] : memref<8x128xf32, #tpu.memory_space<vmem>>, vector<8x128xf32>
    tpu.vector_store %arg4[%c0_17, %c0_18], %34 {strides = array<i32>} : memref<8x128xf32, #tpu.memory_space<vmem>>, vector<8x128xf32>,
    return
  }
}

</mosaic_0001>

<llo_original>
// kernel: tpu_custom_call.1
$region0: #{tpu_custom_call.1}
  #allocation0 [shape = 'u32[]', space=smem, size = 0x4, offset = 0x4, fixed_abs, tag = 'smem constant byte address 0x4 - core index']
  #allocation1 [shape = 'u32[144,128]{1,0:T(1,128)}', space=vmem, size = 0x12000, scoped, tag = 'internal scratch']
  %s0 = inlined_call_operand.hbm [shape: f32[8,128], index: 0, kind: input, shape index: {}]
  %s1 = inlined_call_operand.hbm [shape: f32[128,128], index: 1, kind: input, shape index: {}]
  %s2 = inlined_call_operand.hbm [shape: f32[128,128], index: 2, kind: input, shape index: {}]
  %s3 = inlined_call_operand.vmem [shape: f32[3,128], index: 3, kind: input, shape index: {}]
  %s4 = inlined_call_operand.hbm [shape: f32[8,128], index: 4, kind: output, shape index: {}]
  %s5 = sld [smem:[#allocation0]]
  $region38: #{tpu_custom_call.1} parent=0
    _
  %s7 = ssub.s32 1, %s5
  %s8 = scalar_select 0, %s7, %s5
  $region1: #{tpu_custom_call.1} parent=0
    #allocation2 [shape = 'u8[4096]{0}', space=vmem, size = 0x1000, scoped, tag = 'input window, operand 0, single buffered']
    #allocation3 [shape = 's32[1]{0}', space=sflag, size = 0x4, scoped, tag = 'scoped memory for tpu_custom_call.1']
    #allocation4 [shape = 's32[1]{0}', space=sflag, size = 0x4, scoped, tag = 'scoped memory for tpu_custom_call.1']
    #allocation5 [shape = 'u8[65536]{0}', space=vmem, size = 0x10000, scoped, tag = 'input window, operand 1, single buffered']
    #allocation6 [shape = 's32[1]{0}', space=sflag, size = 0x4, scoped, tag = 'scoped memory for tpu_custom_call.1']
    #allocation7 [shape = 'u8[65536]{0}', space=vmem, size = 0x10000, scoped, tag = 'input window, operand 2, single buffered']
    #allocation8 [shape = 'u8[4096]{0}', space=vmem, size = 0x1000, scoped, tag = 'output window, operand 0, single buffered']
    %9 = vsyncpa [#allocation3], 0
    %10 = vsyncpa [#allocation6], 0
    %11 = vsyncpa [#allocation4], 0
    // Predicated region
    $region2: #{tpu_custom_call.1} parent=1 // pred_check
      _
    $region3: #{tpu_custom_call.1} parent=1 // pred_check_branch
      %13 = sbr.rel (0) target = $region5
    $region4: #{tpu_custom_call.1} parent=1 // pred_region
      %s15 = ssub.s32 128, 128
      %16 = vsyncadd [#allocation3], %s15
      %s18 = sshll.u32 [#allocation2], 4
      %s19 = int_to_ptr.vmem [resolvable:$true] %s18
      %21 = dma.hbm_to_vmem [thread:$0]  %s0, 128, %s19, [#allocation3]
    $region5: #{tpu_custom_call.1} parent=1 // pred_fallthru
      _
    // Predicated region
    $region6: #{tpu_custom_call.1} parent=1 // pred_check
      _
    $region7: #{tpu_custom_call.1} parent=1 // pred_check_branch
      %23 = sbr.rel (0) target = $region9
    $region8: #{tpu_custom_call.1} parent=1 // pred_region
      %s25 = ssub.s32 2048, 2048
      %26 = vsyncadd [#allocation6], %s25
      %s27 = sshll.u32 [#allocation5], 4
      %s28 = int_to_ptr.vmem [resolvable:$true] %s27
      %33 = dma.hbm_to_vmem [thread:$0]  %s1, 2048, %s28, [#allocation6], 128, 128, 8
    $region9: #{tpu_custom_call.1} parent=1 // pred_fallthru
      _
    // Predicated region
    $region10: #{tpu_custom_call.1} parent=1 // pred_check
      _
    $region11: #{tpu_custom_call.1} parent=1 // pred_check_branch
      %35 = sbr.rel (0) target = $region13
    $region12: #{tpu_custom_call.1} parent=1 // pred_region
      %s37 = ssub.s32 2048, 2048
      %38 = vsyncadd [#allocation6], %s37
      %s39 = sshll.u32 [#allocation7], 4
      %s40 = int_to_ptr.vmem [resolvable:$true] %s39
      %45 = dma.hbm_to_vmem [thread:$0]  %s2, 2048, %s40, [#allocation6], 128, 128, 8
    $region13: #{tpu_custom_call.1} parent=1 // pred_fallthru
      _
    // Predicated region
    $region14: #{tpu_custom_call.1} parent=1 // pred_check
      _
    $region15: #{tpu_custom_call.1} parent=1 // pred_check_branch
      %47 = sbr.rel (0) target = $region17
    $region16: #{tpu_custom_call.1} parent=1 // pred_region
      _
    $region17: #{tpu_custom_call.1} parent=1 // pred_fallthru
      _
    // Predicated region
    $region18: #{tpu_custom_call.1} parent=1 // pred_check
      _
    $region19: #{tpu_custom_call.1} parent=1 // pred_check_branch
      %49 = sbr.rel (0) target = $region21
    $region20: #{tpu_custom_call.1} parent=1 // pred_region
      %50 = dma.done [#allocation3], 128
    $region21: #{tpu_custom_call.1} parent=1 // pred_fallthru
      _
    // Predicated region
    $region22: #{tpu_custom_call.1} parent=1 // pred_check
      _
    $region23: #{tpu_custom_call.1} parent=1 // pred_check_branch
      %52 = sbr.rel (0) target = $region25
    $region24: #{tpu_custom_call.1} parent=1 // pred_region
      %53 = dma.done [#allocation6], 2048
    $region25: #{tpu_custom_call.1} parent=1 // pred_fallthru
      _
    // Predicated region
    $region26: #{tpu_custom_call.1} parent=1 // pred_check
      _
    $region27: #{tpu_custom_call.1} parent=1 // pred_check_branch
      %55 = sbr.rel (0) target = $region29
    $region28: #{tpu_custom_call.1} parent=1 // pred_region
      %56 = dma.done [#allocation6], 2048
    $region29: #{tpu_custom_call.1} parent=1 // pred_fallthru
      _
    %v57 = vld [vmem:[#allocation2] sm:$0xff]
    %v58 = vld [vmem:[#allocation5] sm:$0xff]
    %v59 = vld [vmem:[#allocation5 + $0x8] sm:$0xff]
    %v60 = vld [vmem:[#allocation5 + $0x10] sm:$0xff]
    %v61 = vld [vmem:[#allocation5 + $0x18] sm:$0xff]
    %v62 = vld [vmem:[#allocation5 + $0x20] sm:$0xff]
    %v63 = vld [vmem:[#allocation5 + $0x28] sm:$0xff]
    %v64 = vld [vmem:[#allocation5 + $0x30] sm:$0xff]
    %v65 = vld [vmem:[#allocation5 + $0x38] sm:$0xff]
    %v66 = vld [vmem:[#allocation5 + $0x40] sm:$0xff]
    %v67 = vld [vmem:[#allocation5 + $0x48] sm:$0xff]
    %v68 = vld [vmem:[#allocation5 + $0x50] sm:$0xff]
    %v69 = vld [vmem:[#allocation5 + $0x58] sm:$0xff]
    %v70 = vld [vmem:[#allocation5 + $0x60] sm:$0xff]
    %v71 = vld [vmem:[#allocation5 + $0x68] sm:$0xff]
    %v72 = vld [vmem:[#allocation5 + $0x70] sm:$0xff]
    %v73 = vld [vmem:[#allocation5 + $0x78] sm:$0xff]
    %74 = vmatprep.subr.mxu0 0.0
    %75 = vmatpush1.msra.mxu0 %v58
    %76 = vmatprep.subr.mxu0 0.0
    %77 = vmatpush1.msra.mxu0 %v59
    %78 = vmatprep.subr.mxu0 0.0
    %79 = vmatpush1.msra.mxu0 %v60
    %80 = vmatprep.subr.mxu0 0.0
    %81 = vmatpush1.msra.mxu0 %v61
    %82 = vmatprep.subr.mxu0 0.0
    %83 = vmatpush1.msra.mxu0 %v62
    %84 = vmatprep.subr.mxu0 0.0
    %85 = vmatpush1.msra.mxu0 %v63
    %86 = vmatprep.subr.mxu0 0.0
    %87 = vmatpush1.msra.mxu0 %v64
    %88 = vmatprep.subr.mxu0 0.0
    %89 = vmatpush1.msra.mxu0 %v65
    %90 = vmatprep.subr.mxu0 0.0
    %91 = vmatpush1.msra.mxu0 %v66
    %92 = vmatprep.subr.mxu0 0.0
    %93 = vmatpush1.msra.mxu0 %v67
    %94 = vmatprep.subr.mxu0 0.0
    %95 = vmatpush1.msra.mxu0 %v68
    %96 = vmatprep.subr.mxu0 0.0
    %97 = vmatpush1.msra.mxu0 %v69
    %98 = vmatprep.subr.mxu0 0.0
    %99 = vmatpush1.msra.mxu0 %v70
    %100 = vmatprep.subr.mxu0 0.0
    %101 = vmatpush1.msra.mxu0 %v71
    %102 = vmatprep.subr.mxu0 0.0
    %103 = vmatpush1.msra.mxu0 %v72
    %104 = vmatprep.subr.mxu0 0.0
    %105 = vmatpush1.msra.mxu0 %v73
    %106 = vmatprep.subr.mxu0 0.0
    %107 = vmatpush1.msra.mxu0 0.0
    %108 = vmatprep.subr.mxu0 0.0
    %109 = vmatpush1.msra.mxu0 0.0
    %110 = vmatprep.subr.mxu0 0.0
    %111 = vmatpush1.msra.mxu0 0.0
    %112 = vmatprep.subr.mxu0 0.0
    %113 = vmatpush1.msra.mxu0 0.0
    %114 = vmatprep.subr.mxu0 0.0
    %115 = vmatpush1.msra.mxu0 0.0
    %116 = vmatprep.subr.mxu0 0.0
    %117 = vmatpush1.msra.mxu0 0.0
    %118 = vmatprep.subr.mxu0 0.0
    %119 = vmatpush1.msra.mxu0 0.0
    %120 = vmatprep.subr.mxu0 0.0
    %121 = vmatpush1.msra.mxu0 0.0
    %122 = vmatprep.subr.mxu0 0.0
    %123 = vmatpush1.msra.mxu0 0.0
    %124 = vmatprep.subr.mxu0 0.0
    %125 = vmatpush1.msra.mxu0 0.0
    %126 = vmatprep.subr.mxu0 0.0
    %127 = vmatpush1.msra.mxu0 0.0
    %128 = vmatprep.subr.mxu0 0.0
    %129 = vmatpush1.msra.mxu0 0.0
    %130 = vmatprep.subr.mxu0 0.0
    %131 = vmatpush1.msra.mxu0 0.0
    %132 = vmatprep.subr.mxu0 0.0
    %133 = vmatpush1.msra.mxu0 0.0
    %134 = vmatprep.subr.mxu0 0.0
    %135 = vmatpush1.msra.mxu0 0.0
    %136 = vmatprep.subr.mxu0 0.0
    %137 = vmatpush1.msra.mxu0 0.0
    %138 = vmatprep.mubr.f32.mxu0 0.0
    %139 = vmatmul.mubr.f32.gmra.mrb[0].mxu0 %v57
    %v140 = vpop.f32.mrb[0].mxu0
    %v141 = vadd.f32 0.0, %v140
    %v142 = vpop.f32.mrb[0].mxu0
    %143 = vdwg.mxu0
    %v144 = vrot.slane %v141, 4
    %v145 = vadd.f32 %v141, %v144
    %v146 = vrot.slane %v145, 2
    %v147 = vadd.f32 %v145, %v146
    %v148 = vrot.slane %v147, 1
    %v149 = vadd.f32 %v147, %v148
    %v150 = vmul.f32 %v149, 0.125
    %v151 = vmul.f32 %v141, %v141
    %v152 = vrot.slane %v151, 4
    %v153 = vadd.f32 %v151, %v152
    %v154 = vrot.slane %v153, 2
    %v155 = vadd.f32 %v153, %v154
    %v156 = vrot.slane %v155, 1
    %v157 = vadd.f32 %v155, %v156
    %v158 = vmul.f32 %v157, 0.125
    %v159 = vmul.f32 %v150, %v150
    %v160 = vsub.f32 %v158, %v159
    %v161 = vmax.f32 %v160, 0.0
    %v162 = vld [vmem:[%s3] sm:$0x1]
    %v163 = vadd.f32 %v161, 1e-05
    %v164 = vrsqrt.pop %v163
    %v165 = vmul.f32 %v162, %v164
    %v166 = vld [vmem:[%s3 + $0x1] sm:$0x1]
    %v167 = vmul.f32 %v150, %v165
    %v168 = vsub.f32 %v166, %v167
    %v169 = vlaneseq
    %v170 = vshrl.u32 %v169, 7
    %v171 = vsub.s32 0, %v170
    %v172 = vrot.slane %v165, %v171
    %v173 = vmul.f32 %v141, %v172
    %v174 = vlaneseq
    %v175 = vshrl.u32 %v174, 7
    %v176 = vsub.s32 0, %v175
    %v177 = vrot.slane %v168, %v176
    %v178 = vadd.f32 %v173, %v177
    %v179 = vmax.f32 %v178, 0.0
    %v180 = vld [vmem:[#allocation7] sm:$0xff]
    %v181 = vld [vmem:[#allocation7 + $0x8] sm:$0xff]
    %v182 = vld [vmem:[#allocation7 + $0x10] sm:$0xff]
    %v183 = vld [vmem:[#allocation7 + $0x18] sm:$0xff]
    %v184 = vld [vmem:[#allocation7 + $0x20] sm:$0xff]
    %v185 = vld [vmem:[#allocation7 + $0x28] sm:$0xff]
    %v186 = vld [vmem:[#allocation7 + $0x30] sm:$0xff]
    %v187 = vld [vmem:[#allocation7 + $0x38] sm:$0xff]
    %v188 = vld [vmem:[#allocation7 + $0x40] sm:$0xff]
    %v189 = vld [vmem:[#allocation7 + $0x48] sm:$0xff]
    %v190 = vld [vmem:[#allocation7 + $0x50] sm:$0xff]
    %v191 = vld [vmem:[#allocation7 + $0x58] sm:$0xff]
    %v192 = vld [vmem:[#allocation7 + $0x60] sm:$0xff]
    %v193 = vld [vmem:[#allocation7 + $0x68] sm:$0xff]
    %v194 = vld [vmem:[#allocation7 + $0x70] sm:$0xff]
    %v195 = vld [vmem:[#allocation7 + $0x78] sm:$0xff]
    %v196 = vld [vmem:[%s3 + $0x2] sm:$0x1]
    %v197 = vlaneseq
    %v198 = vshrl.u32 %v197, 7
    %v199 = vsub.s32 0, %v198
    %v200 = vrot.slane %v196, %v199
    %201 = vmatprep.subr.mxu0 0.0
    %202 = vmatpush1.msra.mxu0 %v180
    %203 = vmatprep.subr.mxu0 0.0
    %204 = vmatpush1.msra.mxu0 %v181
    %205 = vmatprep.subr.mxu0 0.0
    %206 = vmatpush1.msra.mxu0 %v182
    %207 = vmatprep.subr.mxu0 0.0
    %208 = vmatpush1.msra.mxu0 %v183
    %209 = vmatprep.subr.mxu0 0.0
    %210 = vmatpush1.msra.mxu0 %v184
    %211 = vmatprep.subr.mxu0 0.0
    %212 = vmatpush1.msra.mxu0 %v185
    %213 = vmatprep.subr.mxu0 0.0
    %214 = vmatpush1.msra.mxu0 %v186
    %215 = vmatprep.subr.mxu0 0.0
    %216 = vmatpush1.msra.mxu0 %v187
    %217 = vmatprep.subr.mxu0 0.0
    %218 = vmatpush1.msra.mxu0 %v188
    %219 = vmatprep.subr.mxu0 0.0
    %220 = vmatpush1.msra.mxu0 %v189
    %221 = vmatprep.subr.mxu0 0.0
    %222 = vmatpush1.msra.mxu0 %v190
    %223 = vmatprep.subr.mxu0 0.0
    %224 = vmatpush1.msra.mxu0 %v191
    %225 = vmatprep.subr.mxu0 0.0
    %226 = vmatpush1.msra.mxu0 %v192
    %227 = vmatprep.subr.mxu0 0.0
    %228 = vmatpush1.msra.mxu0 %v193
    %229 = vmatprep.subr.mxu0 0.0
    %230 = vmatpush1.msra.mxu0 %v194
    %231 = vmatprep.subr.mxu0 0.0
    %232 = vmatpush1.msra.mxu0 %v195
    %233 = vmatprep.subr.mxu0 0.0
    %234 = vmatpush1.msra.mxu0 0.0
    %235 = vmatprep.subr.mxu0 0.0
    %236 = vmatpush1.msra.mxu0 0.0
    %237 = vmatprep.subr.mxu0 0.0
    %238 = vmatpush1.msra.mxu0 0.0
    %239 = vmatprep.subr.mxu0 0.0
    %240 = vmatpush1.msra.mxu0 0.0
    %241 = vmatprep.subr.mxu0 0.0
    %242 = vmatpush1.msra.mxu0 0.0
    %243 = vmatprep.subr.mxu0 0.0
    %244 = vmatpush1.msra.mxu0 0.0
    %245 = vmatprep.subr.mxu0 0.0
    %246 = vmatpush1.msra.mxu0 0.0
    %247 = vmatprep.subr.mxu0 0.0
    %248 = vmatpush1.msra.mxu0 0.0
    %249 = vmatprep.subr.mxu0 0.0
    %250 = vmatpush1.msra.mxu0 0.0
    %251 = vmatprep.subr.mxu0 0.0
    %252 = vmatpush1.msra.mxu0 0.0
    %253 = vmatprep.subr.mxu0 0.0
    %254 = vmatpush1.msra.mxu0 0.0
    %255 = vmatprep.subr.mxu0 0.0
    %256 = vmatpush1.msra.mxu0 0.0
    %257 = vmatprep.subr.mxu0 0.0
    %258 = vmatpush1.msra.mxu0 0.0
    %259 = vmatprep.subr.mxu0 0.0
    %260 = vmatpush1.msra.mxu0 0.0
    %261 = vmatprep.subr.mxu0 0.0
    %262 = vmatpush1.msra.mxu0 0.0
    %263 = vmatprep.subr.mxu0 0.0
    %264 = vmatpush1.msra.mxu0 0.0
    %265 = vmatprep.mubr.f32.mxu0 0.0
    %266 = vmatmul.mubr.f32.gmra.mrb[0].mxu0 %v179
    %v267 = vpop.f32.mrb[0].mxu0
    %v268 = vadd.f32 %v200, %v267
    %v269 = vpop.f32.mrb[0].mxu0
    %270 = vdwg.mxu0
    %271 = vst [vmem:[#allocation8] sm:$0xff] %v268
    // Predicated region
    $region30: #{tpu_custom_call.1} parent=1 // pred_check
      _
    $region31: #{tpu_custom_call.1} parent=1 // pred_check_branch
      %273 = sbr.rel (0) target = $region33
    $region32: #{tpu_custom_call.1} parent=1 // pred_region
      %s275 = ssub.s32 128, 128
      %276 = vsyncadd [#allocation4], %s275
      %s278 = sshll.u32 [#allocation8], 4
      %s279 = int_to_ptr.vmem [resolvable:$true] %s278
      %281 = dma.vmem_to_hbm [thread:$0]  %s279, 128, %s4, [#allocation4]
    $region33: #{tpu_custom_call.1} parent=1 // pred_fallthru
      _
    // Predicated region
    $region34: #{tpu_custom_call.1} parent=1 // pred_check
      _
    $region35: #{tpu_custom_call.1} parent=1 // pred_check_branch
      %283 = sbr.rel (0) target = $region37
    $region36: #{tpu_custom_call.1} parent=1 // pred_region
      %284 = dma.done [#allocation4], 128
    $region37: #{tpu_custom_call.1} parent=1 // pred_fallthru
      _
    %285 = vsyncpa [#allocation3], 1
    %286 = vsyncpa [#allocation6], 1
    %287 = vsyncpa [#allocation4], 1

</llo_original>
